<compile_context>
chip_gen: v7x
topology: tpu7x:2x2x1
jax: 0.10.0
libtpu: 0.0.40
codegen_flags: <defaults>
</compile_context>

<pallas_src>
import functools

import jax
import jax.numpy as jnp
from jax.experimental import pallas as pl
from jax.experimental.pallas import tpu as pltpu


def _round_up(x, m):
    return ((x + m - 1) // m) * m


# --------------------------------------------------------------------------- #
# Fast path: full embedding table resident in VMEM, one MXU matmul per chunk.
# --------------------------------------------------------------------------- #
def _full_table_kernel(idx_ref, tab_ref, out_ref, *, chunk):
    """idx_ref: [1, B] int32 raw row ids.  tab_ref: [d_flat, Ppad] resident table
    (feature-major, zero-padded columns).  out_ref: [d_flat, B] lane-dense."""
    bags = out_ref.shape[-1]
    p_pad = tab_ref.shape[-1]
    tab = tab_ref[...]                                 # hoisted: loaded once per tile
    for c in range(bags // chunk):                     # short static inner loop
        sl = pl.ds(c * chunk, chunk)
        ids = idx_ref[:, sl]                           # [1, chunk]
        rows = jax.lax.broadcasted_iota(jnp.int32, (p_pad, chunk), 0)
        one_hot = (rows == ids).astype(jnp.float32)    # [Ppad, chunk]
        out_ref[:, sl] = jnp.dot(
            tab, one_hot, preferred_element_type=jnp.float32).astype(out_ref.dtype)


# --------------------------------------------------------------------------- #
# General path: single block-diagonal gather (core0 | fused core1*core2), then
# an unrolled accumulation loop over r1 (bags ride the lane axis on the VPU).
# --------------------------------------------------------------------------- #
def _tt_fused_kernel(idx_ref, lhs_ref, out_ref, *, q0, q12, r1,
                     m0_pad, p0_pad, chunk):
    """idx_ref: [2, B] int32 = (i0, i12) per bag.
    lhs_ref : [m0_pad + m12_pad, p0_pad + p12_pad] resident block-diagonal LHS:
                rows [0, R1*Q0)               : core0, row r1*Q0 + q0,  col p0
                rows [m0_pad, m0_pad+R1*Q12)  : G12,   row r1*Q12 + q12, col p0_pad + p12
    out_ref : [Q0*Q12, B] lane-dense (bags on lanes)."""
    bags = out_ref.shape[-1]
    p_total = lhs_ref.shape[-1]
    lhs = lhs_ref[...]                                 # hoisted: loaded once per tile
    for c in range(bags // chunk):
        sl = pl.ds(c * chunk, chunk)
        ids = idx_ref[:, sl]                           # [2, chunk]
        i0 = ids[0:1, :]                               # [1, chunk]
        i12 = ids[1:2, :]
        rows = jax.lax.broadcasted_iota(jnp.int32, (p_total, chunk), 0)
        # Combined one-hot for both gather segments (one matmul instead of three).
        one_hot = jnp.where(rows < p0_pad,
                            rows == i0,
                            (rows - p0_pad) == i12).astype(jnp.float32)
        g = jnp.dot(lhs, one_hot, preferred_element_type=jnp.float32)
        # r1 contraction as an unrolled accumulation loop: live set = gathered factors
        # + one [Q0, Q12, chunk] accumulator + one term (no 64-vreg broadcast product).
        acc = jnp.zeros((q0, q12, chunk), jnp.float32)
        for rr in range(r1):
            a = g[rr * q0:(rr + 1) * q0, :]                        # [Q0,  chunk]
            b = g[m0_pad + rr * q12:m0_pad + (rr + 1) * q12, :]    # [Q12, chunk]
            acc = acc + a[:, None, :] * b[None, :, :]
        out_ref[:, sl] = acc.reshape(q0 * q12, chunk).astype(out_ref.dtype)


def fbtt_embedding_forward(indices, cores, p_shapes, q_shapes, ranks, embedding_dim,
                           *, bags_per_tile=1024, chunk=256, out_dtype=jnp.float32,
                           out_layout="nd", force_path=None,
                           full_table_budget_bytes=2 << 20):
    """indices: int array [n].  Returns [n, embedding_dim] (out_layout="nd", default)
    or the lane-dense [embedding_dim, n] slab (out_layout="dn", for consumer fusion)."""
    c0, c1, c2 = cores
    P0, P1, P2 = p_shapes
    Q0, Q1, Q2 = q_shapes
    R1, R2 = ranks
    n = int(indices.shape[0])
    Q12 = Q1 * Q2
    d_flat = Q0 * Q12
    assert d_flat >= embedding_dim, "prod(q_shapes) must cover embedding_dim"
    # NOTE: indices are assumed to lie in [0, P0*P1*P2), as in TTEmbeddingBag.

    chunk = int(chunk)
    assert chunk % 128 == 0 and chunk >= 128
    # Adaptive bag tile: as large as bags_per_tile allows, but small enough that the
    # grid has >= 2 steps when the batch allows (v7x: parallel bag axis -> 2 TCs).
    need_chunks = max(1, _round_up(max(n, 1), chunk) // chunk)
    max_chunks = max(1, int(bags_per_tile) // chunk)
    tile_chunks = 1 if need_chunks == 1 else min(max_chunks, (need_chunks + 1) // 2)
    B = tile_chunks * chunk
    n_pad = _round_up(max(n, 1), B)

    idx = indices.astype(jnp.int32)
    num_rows = P0 * P1 * P2
    table_bytes = d_flat * _round_up(num_rows, 128) * 4
    use_table = (force_path == "table") or (
        force_path is None and table_bytes <= full_table_budget_bytes)

    if use_table:
        # ---- small-table fast path: materialize the whole table once (one XLA op). ----
        full = jnp.einsum('xir,yrjs,zsk->xyzijk', c0, c1, c2)    # [P0,P1,P2,Q0,Q1,Q2]
        table_t = full.reshape(num_rows, d_flat).T               # [d_flat, P] feature-major
        table_t = jnp.pad(table_t, ((0, 0), (0, _round_up(num_rows, 128) - num_rows)))
        idx_in = jnp.pad(idx, (0, n_pad - n)).reshape(1, n_pad)  # padded bags -> row 0
        kernel = functools.partial(_full_table_kernel, chunk=chunk)
        in_arrays = (idx_in, table_t)
        in_specs = [pl.BlockSpec((1, B), lambda i: (0, i)),       # streamed indices
                    pl.BlockSpec(table_t.shape, lambda i: (0, 0))]  # resident table
        resident_bytes = int(table_t.size) * 4
        idx_rows = 1
    else:
        # ---- general TT path: pre-contract cores 1&2 over r2 (fused G12); pack core0
        # and G12 into one resident block-diagonal LHS for a single gather matmul. ----
        # TODO(synk): for very large P1*P2 the fused G12 may not fit VMEM; a streaming
        # three-core variant (per-core gathers + r2/r1 accumulation loops) is not
        # implemented here.
        m0, m12 = R1 * Q0, R1 * Q12
        m0_pad, m12_pad = _round_up(m0, 8), _round_up(m12, 8)
        p0_pad, p12_pad = _round_up(P0, 8), _round_up(P1 * P2, 8)
        c0_mat = jnp.transpose(c0, (2, 1, 0)).reshape(m0, P0)     # row r1*Q0+q0, col p0
        g12_mat = jnp.einsum('yrjs,zsk->rjkyz', c1, c2).reshape(m12, P1 * P2)
        lhs = jnp.zeros((m0_pad + m12_pad, p0_pad + p12_pad), jnp.float32)
        lhs = lhs.at[:m0, :P0].set(c0_mat)
        lhs = lhs.at[m0_pad:m0_pad + m12, p0_pad:p0_pad + P1 * P2].set(g12_mat)
        i0 = idx // (P1 * P2)
        i12 = idx % (P1 * P2)
        idx_in = jnp.pad(jnp.stack([i0, i12], axis=0), ((0, 0), (0, n_pad - n)))
        kernel = functools.partial(_tt_fused_kernel, q0=Q0, q12=Q12, r1=R1,
                                   m0_pad=m0_pad, p0_pad=p0_pad, chunk=chunk)
        in_arrays = (idx_in, lhs)
        in_specs = [pl.BlockSpec((2, B), lambda i: (0, i)),
                    pl.BlockSpec(lhs.shape, lambda i: (0, 0))]
        resident_bytes = int(lhs.size) * 4
        idx_rows = 2

    # Explicit VMEM budget (v7x has only 64 MiB per TC); generous headroom, clamped.
    per_step_bytes = 2 * B * 4 * (idx_rows + d_flat)              # double-buffered blocks
    vmem_limit = int(min(64 << 20, max(16 << 20, 4 * (resident_bytes + per_step_bytes))))

    out_t = pl.pallas_call(
        kernel,
        out_shape=jax.ShapeDtypeStruct((d_flat, n_pad), out_dtype),
        grid_spec=pltpu.PrefetchScalarGridSpec(
            num_scalar_prefetch=0,
            grid=(n_pad // B,),
            in_specs=in_specs,
            out_specs=pl.BlockSpec((d_flat, B), lambda i: (0, i)),  # lane-dense output
        ),
        compiler_params=pltpu.CompilerParams(
            dimension_semantics=("parallel",),
            vmem_limit_bytes=vmem_limit),
    )(*in_arrays)

    if out_layout == "dn":
        # Lane-dense layout for downstream consumer fusion (no transpose round trip).
        return out_t[:embedding_dim, :n]
    # Module-compatible [n, embedding_dim]; this transpose is the one remaining output
    # HBM round trip (avoid it with out_layout="dn" when the consumer allows).
    return out_t.T[:n, :embedding_dim]


def _reference(indices, cores, p_shapes, embedding_dim):
    c0, c1, c2 = cores
    P0, P1, P2 = p_shapes
    idx = indices.astype(jnp.int32)
    i0 = idx // (P1 * P2)
    i1 = (idx // P2) % P1
    i2 = idx % P2
    emb4 = jnp.einsum('nir,nrjs,nsk->nijk', c0[i0], c1[i1], c2[i2])
    return emb4.reshape(indices.shape[0], -1)[:, :embedding_dim]


if __name__ == "__main__":
    # Module hyper-parameters (small, consistent with TTEmbeddingBag):
    tt_p_shapes = (4, 5, 6)        # prod = 120 >= num_embeddings
    tt_q_shapes = (4, 4, 2)        # prod = 32 == embedding_dim
    tt_ranks = (8, 8)
    num_embeddings = 120
    embedding_dim = 32

    P0, P1, P2 = tt_p_shapes
    Q0, Q1, Q2 = tt_q_shapes
    R1, R2 = tt_ranks

    # Deterministic parameter init (weight_dist='normal' in the module).
    key = jax.random.PRNGKey(0)
    k0, k1, k2, k3, k4, k5 = jax.random.split(key, 6)
    core0 = 0.1 * jax.random.normal(k0, (P0, Q0, R1), dtype=jnp.float32)
    core1 = 0.1 * jax.random.normal(k1, (P1, R1, Q1, R2), dtype=jnp.float32)
    core2 = 0.1 * jax.random.normal(k2, (P2, R2, Q2), dtype=jnp.float32)
    cores = (core0, core1, core2)

    def run_case(n, k, force_path):
        idxs = jax.random.randint(k, (n,), 0, num_embeddings, dtype=jnp.int32)
        out = jax.block_until_ready(
            fbtt_embedding_forward(idxs, cores, tt_p_shapes, tt_q_shapes, tt_ranks,
                                   embedding_dim, force_path=force_path))
        ref = jax.block_until_ready(_reference(idxs, cores, tt_p_shapes, embedding_dim))
        assert out.shape == (n, embedding_dim)
        assert jnp.allclose(out, ref, rtol=1e-4, atol=1e-5), (
            f"mismatch vs. reference (n={n}, path={force_path})")

    run_case(8, k3, None)        # fast (full-table) path, single padded tile
    run_case(300, k4, None)      # fast path, 2 grid steps on the parallel bag axis
    run_case(300, k4, "tt")      # general fused-TT path, same data
    run_case(2048, k5, "tt")     # general fused-TT path, 4-chunk tiles, grid of 2

    # TODO(synk): training-time sparse SGD / atomic grad accumulation and the optional
    # LRU cache of the FBTT backend have no forward-pass Pallas equivalent (forward only).
    print("KERNEL_OK")
</pallas_src>

<mosaic_0001>
module attributes {stable_mosaic.version = 11 : i64} {
  func.func @_full_table_kernel(%arg0: i32, %arg1: memref<1x256xi32, #tpu.memory_space<vmem>>, %arg2: memref<32x128xf32, #tpu.memory_space<vmem>>, %arg3: memref<32x256xf32, #tpu.memory_space<vmem>>) attributes {dimension_semantics = [#tpu.dimension_semantics<parallel>], iteration_bounds = array<i64: 1>, scalar_prefetch = 0 : i64, scratch_operands = 0 : i64, tpu.core_type = #tpu.core_type<tc>, window_params = [{transform_indices = @transform_0, window_bounds = array<i64: 1, 256>}, {pipeline_mode = #tpu.pipeline_mode<synchronous>, transform_indices = @transform_1, window_bounds = array<i64: 32, 128>}, {transform_indices = @transform_2, window_bounds = array<i64: 32, 256>}]} {
    %c0 = arith.constant 0 : index
    %c0_0 = arith.constant 0 : index
    %0 = vector.load %arg2[%c0, %c0_0] : memref<32x128xf32, #tpu.memory_space<vmem>>, vector<32x128xf32>
    %c0_1 = arith.constant 0 : index
    %c0_2 = arith.constant 0 : index
    %1 = vector.load %arg1[%c0_1, %c0_2] : memref<1x256xi32, #tpu.memory_space<vmem>>, vector<1x256xi32>
    %2 = tpu.iota {dimensions = array<i32: 0>} : vector<128x256xi32>
    %3 = vector.broadcast %1 : vector<1x256xi32> to vector<128x256xi32>
    %4 = arith.cmpi eq, %2, %3 : vector<128x256xi32>
    %5 = arith.extui %4 : vector<128x256xi1> to vector<128x256xi32>
    %6 = arith.sitofp %5 : vector<128x256xi32> to vector<128x256xf32>
    %cst = arith.constant dense<0.000000e+00> : vector<32x256xf32>
    %7 = tpu.matmul %0, %6, %cst {dimension_numbers = #tpu.dot_dimension_numbers<[1], [0], [0], [1], [0, 0, 1, 1], [], []>} : vector<32x128xf32>, vector<128x256xf32>, vector<32x256xf32> -> vector<32x256xf32>
    %c0_3 = arith.constant 0 : index
    %c0_4 = arith.constant 0 : index
    %8 = vector.load %arg3[%c0_3, %c0_4] : memref<32x256xf32, #tpu.memory_space<vmem>>, vector<32x256xf32>
    tpu.vector_store %arg3[%c0_3, %c0_4], %7 {strides = array<i32>} : memref<32x256xf32, #tpu.memory_space<vmem>>, vector<32x256xf32>,
    return
  }
  func.func @transform_0(%arg0: i32) -> (i32, i32) {
    %c0_i32 = arith.constant 0 : i32
    %c0_i32_0 = arith.constant 0 : i32
    return %c0_i32, %arg0 : i32, i32
  }
  func.func @transform_1(%arg0: i32) -> (i32, i32) {
    %c0_i32 = arith.constant 0 : i32
    %c0_i32_0 = arith.constant 0 : i32
    %c0_i32_1 = arith.constant 0 : i32
    return %c0_i32, %c0_i32_0 : i32, i32
  }
  func.func @transform_2(%arg0: i32) -> (i32, i32) {
    %c0_i32 = arith.constant 0 : i32
    %c0_i32_0 = arith.constant 0 : i32
    return %c0_i32, %arg0 : i32, i32
  }
}

</mosaic_0001>

<llo_original>
// kernel: tpu_custom_call.1
$region0: #{tpu_custom_call.1}
  #allocation0 [shape = 'u32[]', space=smem, size = 0x4, offset = 0x4, fixed_abs, tag = 'smem constant byte address 0x4 - core index']
  #allocation1 [shape = 'u32[144,128]{1,0:T(1,128)}', space=vmem, size = 0x12000, scoped, tag = 'internal scratch']
  %s0 = inlined_call_operand.hbm [shape: s32[1,256], index: 0, kind: input, shape index: {}]
  %s1 = inlined_call_operand.hbm [shape: f32[32,128], index: 1, kind: input, shape index: {}]
  %s2 = inlined_call_operand.hbm [shape: f32[32,256], index: 2, kind: output, shape index: {}]
  %s3 = sld [smem:[#allocation0]]
  $region26: #{tpu_custom_call.1} parent=0
    _
  %s5 = ssub.s32 1, %s3
  %s6 = scalar_select 0, %s5, %s3
  $region1: #{tpu_custom_call.1} parent=0
    #allocation2 [shape = 'u8[1024]{0}', space=vmem, size = 0x400, scoped, tag = 'input window, operand 0, single buffered']
    #allocation3 [shape = 's32[1]{0}', space=sflag, size = 0x4, scoped, tag = 'scoped memory for tpu_custom_call.1']
    #allocation4 [shape = 's32[1]{0}', space=sflag, size = 0x4, scoped, tag = 'scoped memory for tpu_custom_call.1']
    #allocation5 [shape = 'u8[16384]{0}', space=vmem, size = 0x4000, scoped, tag = 'input window, operand 1, single buffered']
    #allocation6 [shape = 's32[1]{0}', space=sflag, size = 0x4, scoped, tag = 'scoped memory for tpu_custom_call.1']
    #allocation7 [shape = 'u8[32768]{0}', space=vmem, size = 0x8000, scoped, tag = 'output window, operand 0, single buffered']
    %7 = vsyncpa [#allocation3], 0
    %8 = vsyncpa [#allocation6], 0
    %9 = vsyncpa [#allocation4], 0
    // Predicated region
    $region2: #{tpu_custom_call.1} parent=1 // pred_check
      _
    $region3: #{tpu_custom_call.1} parent=1 // pred_check_branch
      %11 = sbr.rel (0) target = $region5
    $region4: #{tpu_custom_call.1} parent=1 // pred_region
      %s13 = ssub.s32 32, 32
      %14 = vsyncadd [#allocation3], %s13
      %s16 = sshll.u32 [#allocation2], 4
      %s17 = int_to_ptr.vmem [resolvable:$true] %s16
      %19 = dma.hbm_to_vmem [thread:$0]  %s0, 32, %s17, [#allocation3]
    $region5: #{tpu_custom_call.1} parent=1 // pred_fallthru
      _
    // Predicated region
    $region6: #{tpu_custom_call.1} parent=1 // pred_check
      _
    $region7: #{tpu_custom_call.1} parent=1 // pred_check_branch
      %21 = sbr.rel (0) target = $region9
    $region8: #{tpu_custom_call.1} parent=1 // pred_region
      %s23 = ssub.s32 512, 512
      %24 = vsyncadd [#allocation6], %s23
      %s25 = sshll.u32 [#allocation5], 4
      %s26 = int_to_ptr.vmem [resolvable:$true] %s25
      %31 = dma.hbm_to_vmem [thread:$0]  %s1, 512, %s26, [#allocation6], 128, 128, 8
    $region9: #{tpu_custom_call.1} parent=1 // pred_fallthru
      _
    // Predicated region
    $region10: #{tpu_custom_call.1} parent=1 // pred_check
      _
    $region11: #{tpu_custom_call.1} parent=1 // pred_check_branch
      %33 = sbr.rel (0) target = $region13
    $region12: #{tpu_custom_call.1} parent=1 // pred_region
      %34 = dma.done [#allocation3], 32
    $region13: #{tpu_custom_call.1} parent=1 // pred_fallthru
      _
    // Predicated region
    $region14: #{tpu_custom_call.1} parent=1 // pred_check
      _
    $region15: #{tpu_custom_call.1} parent=1 // pred_check_branch
      %36 = sbr.rel (0) target = $region17
    $region16: #{tpu_custom_call.1} parent=1 // pred_region
      %37 = dma.done [#allocation6], 512
    $region17: #{tpu_custom_call.1} parent=1 // pred_fallthru
      _
    %v38 = vld [vmem:[#allocation5] sm:$0xff]
    %v39 = vld [vmem:[#allocation5 + $0x8] sm:$0xff]
    %v40 = vld [vmem:[#allocation5 + $0x10] sm:$0xff]
    %v41 = vld [vmem:[#allocation5 + $0x18] sm:$0xff]
    %v42 = vld [vmem:[#allocation2] sm:$0x3]
    %v43 = vlaneseq
    %v44 = vshrl.u32 %v43, 7
    %v45 = vadd.s32 %v44, 8
    %v46 = vadd.s32 %v44, 16
    %v47 = vadd.s32 %v44, 24
    %v48 = vadd.s32 %v44, 32
    %v49 = vadd.s32 %v44, 40
    %v50 = vadd.s32 %v44, 48
    %v51 = vadd.s32 %v44, 56
    %v52 = vadd.s32 %v44, 64
    %v53 = vadd.s32 %v44, 72
    %v54 = vadd.s32 %v44, 80
    %v55 = vadd.s32 %v44, 88
    %v56 = vadd.s32 %v44, 96
    %v57 = vadd.s32 %v44, 104
    %v58 = vadd.s32 %v44, 112
    %v59 = vadd.s32 %v44, 120
    %v60 = vlaneseq
    %v61 = vshrl.u32 %v60, 7
    %v62 = vsub.s32 0, %v61
    %v63 = vrot.slane %v42, %v62
    %v64 = vlaneseq
    %v65 = vshrl.u32 %v64, 7
    %v66 = vsub.s32 1, %v65
    %v67 = vrot.slane %v42, %v66
    %vm68 = vcmp.eq.s32.totalorder %v44, %v63
    %vm69 = vcmp.eq.s32.totalorder %v44, %v67
    %vm70 = vcmp.eq.s32.totalorder %v45, %v63
    %vm71 = vcmp.eq.s32.totalorder %v45, %v67
    %vm72 = vcmp.eq.s32.totalorder %v46, %v63
    %vm73 = vcmp.eq.s32.totalorder %v46, %v67
    %vm74 = vcmp.eq.s32.totalorder %v47, %v63
    %vm75 = vcmp.eq.s32.totalorder %v47, %v67
    %vm76 = vcmp.eq.s32.totalorder %v48, %v63
    %vm77 = vcmp.eq.s32.totalorder %v48, %v67
    %vm78 = vcmp.eq.s32.totalorder %v49, %v63
    %vm79 = vcmp.eq.s32.totalorder %v49, %v67
    %vm80 = vcmp.eq.s32.totalorder %v50, %v63
    %vm81 = vcmp.eq.s32.totalorder %v50, %v67
    %vm82 = vcmp.eq.s32.totalorder %v51, %v63
    %vm83 = vcmp.eq.s32.totalorder %v51, %v67
    %vm84 = vcmp.eq.s32.totalorder %v52, %v63
    %vm85 = vcmp.eq.s32.totalorder %v52, %v67
    %vm86 = vcmp.eq.s32.totalorder %v53, %v63
    %vm87 = vcmp.eq.s32.totalorder %v53, %v67
    %vm88 = vcmp.eq.s32.totalorder %v54, %v63
    %vm89 = vcmp.eq.s32.totalorder %v54, %v67
    %vm90 = vcmp.eq.s32.totalorder %v55, %v63
    %vm91 = vcmp.eq.s32.totalorder %v55, %v67
    %vm92 = vcmp.eq.s32.totalorder %v56, %v63
    %vm93 = vcmp.eq.s32.totalorder %v56, %v67
    %vm94 = vcmp.eq.s32.totalorder %v57, %v63
    %vm95 = vcmp.eq.s32.totalorder %v57, %v67
    %vm96 = vcmp.eq.s32.totalorder %v58, %v63
    %vm97 = vcmp.eq.s32.totalorder %v58, %v67
    %vm98 = vcmp.eq.s32.totalorder %v59, %v63
    %vm99 = vcmp.eq.s32.totalorder %v59, %v67
    %v100 = vsel %vm68, 1, 0
    %v101 = vsel %vm69, 1, 0
    %v102 = vsel %vm70, 1, 0
    %v103 = vsel %vm71, 1, 0
    %v104 = vsel %vm72, 1, 0
    %v105 = vsel %vm73, 1, 0
    %v106 = vsel %vm74, 1, 0
    %v107 = vsel %vm75, 1, 0
    %v108 = vsel %vm76, 1, 0
    %v109 = vsel %vm77, 1, 0
    %v110 = vsel %vm78, 1, 0
    %v111 = vsel %vm79, 1, 0
    %v112 = vsel %vm80, 1, 0
    %v113 = vsel %vm81, 1, 0
    %v114 = vsel %vm82, 1, 0
    %v115 = vsel %vm83, 1, 0
    %v116 = vsel %vm84, 1, 0
    %v117 = vsel %vm85, 1, 0
    %v118 = vsel %vm86, 1, 0
    %v119 = vsel %vm87, 1, 0
    %v120 = vsel %vm88, 1, 0
    %v121 = vsel %vm89, 1, 0
    %v122 = vsel %vm90, 1, 0
    %v123 = vsel %vm91, 1, 0
    %v124 = vsel %vm92, 1, 0
    %v125 = vsel %vm93, 1, 0
    %v126 = vsel %vm94, 1, 0
    %v127 = vsel %vm95, 1, 0
    %v128 = vsel %vm96, 1, 0
    %v129 = vsel %vm97, 1, 0
    %v130 = vsel %vm98, 1, 0
    %v131 = vsel %vm99, 1, 0
    %v132 = vcvt.s32.f32 %v100
    %v133 = vcvt.s32.f32 %v101
    %v134 = vcvt.s32.f32 %v102
    %v135 = vcvt.s32.f32 %v103
    %v136 = vcvt.s32.f32 %v104
    %v137 = vcvt.s32.f32 %v105
    %v138 = vcvt.s32.f32 %v106
    %v139 = vcvt.s32.f32 %v107
    %v140 = vcvt.s32.f32 %v108
    %v141 = vcvt.s32.f32 %v109
    %v142 = vcvt.s32.f32 %v110
    %v143 = vcvt.s32.f32 %v111
    %v144 = vcvt.s32.f32 %v112
    %v145 = vcvt.s32.f32 %v113
    %v146 = vcvt.s32.f32 %v114
    %v147 = vcvt.s32.f32 %v115
    %v148 = vcvt.s32.f32 %v116
    %v149 = vcvt.s32.f32 %v117
    %v150 = vcvt.s32.f32 %v118
    %v151 = vcvt.s32.f32 %v119
    %v152 = vcvt.s32.f32 %v120
    %v153 = vcvt.s32.f32 %v121
    %v154 = vcvt.s32.f32 %v122
    %v155 = vcvt.s32.f32 %v123
    %v156 = vcvt.s32.f32 %v124
    %v157 = vcvt.s32.f32 %v125
    %v158 = vcvt.s32.f32 %v126
    %v159 = vcvt.s32.f32 %v127
    %v160 = vcvt.s32.f32 %v128
    %v161 = vcvt.s32.f32 %v129
    %v162 = vcvt.s32.f32 %v130
    %v163 = vcvt.s32.f32 %v131
    %164 = vmatprep.subr.mxu0 %v133
    %165 = vmatpush1.msra.mxu0 %v132
    %166 = vmatprep.subr.mxu0 %v135
    %167 = vmatpush1.msra.mxu0 %v134
    %168 = vmatprep.subr.mxu0 %v137
    %169 = vmatpush1.msra.mxu0 %v136
    %170 = vmatprep.subr.mxu0 %v139
    %171 = vmatpush1.msra.mxu0 %v138
    %172 = vmatprep.subr.mxu0 %v141
    %173 = vmatpush1.msra.mxu0 %v140
    %174 = vmatprep.subr.mxu0 %v143
    %175 = vmatpush1.msra.mxu0 %v142
    %176 = vmatprep.subr.mxu0 %v145
    %177 = vmatpush1.msra.mxu0 %v144
    %178 = vmatprep.subr.mxu0 %v147
    %179 = vmatpush1.msra.mxu0 %v146
    %180 = vmatprep.subr.mxu0 %v149
    %181 = vmatpush1.msra.mxu0 %v148
    %182 = vmatprep.subr.mxu0 %v151
    %183 = vmatpush1.msra.mxu0 %v150
    %184 = vmatprep.subr.mxu0 %v153
    %185 = vmatpush1.msra.mxu0 %v152
    %186 = vmatprep.subr.mxu0 %v155
    %187 = vmatpush1.msra.mxu0 %v154
    %188 = vmatprep.subr.mxu0 %v157
    %189 = vmatpush1.msra.mxu0 %v156
    %190 = vmatprep.subr.mxu0 %v159
    %191 = vmatpush1.msra.mxu0 %v158
    %192 = vmatprep.subr.mxu0 %v161
    %193 = vmatpush1.msra.mxu0 %v160
    %194 = vmatprep.subr.mxu0 %v163
    %195 = vmatpush1.msra.mxu0 %v162
    %196 = vmatprep.subr.mxu0 0.0
    %197 = vmatpush1.msra.mxu0 0.0
    %198 = vmatprep.subr.mxu0 0.0
    %199 = vmatpush1.msra.mxu0 0.0
    %200 = vmatprep.subr.mxu0 0.0
    %201 = vmatpush1.msra.mxu0 0.0
    %202 = vmatprep.subr.mxu0 0.0
    %203 = vmatpush1.msra.mxu0 0.0
    %204 = vmatprep.subr.mxu0 0.0
    %205 = vmatpush1.msra.mxu0 0.0
    %206 = vmatprep.subr.mxu0 0.0
    %207 = vmatpush1.msra.mxu0 0.0
    %208 = vmatprep.subr.mxu0 0.0
    %209 = vmatpush1.msra.mxu0 0.0
    %210 = vmatprep.subr.mxu0 0.0
    %211 = vmatpush1.msra.mxu0 0.0
    %212 = vmatprep.subr.mxu0 0.0
    %213 = vmatpush1.msra.mxu0 0.0
    %214 = vmatprep.subr.mxu0 0.0
    %215 = vmatpush1.msra.mxu0 0.0
    %216 = vmatprep.subr.mxu0 0.0
    %217 = vmatpush1.msra.mxu0 0.0
    %218 = vmatprep.subr.mxu0 0.0
    %219 = vmatpush1.msra.mxu0 0.0
    %220 = vmatprep.subr.mxu0 0.0
    %221 = vmatpush1.msra.mxu0 0.0
    %222 = vmatprep.subr.mxu0 0.0
    %223 = vmatpush1.msra.mxu0 0.0
    %224 = vmatprep.subr.mxu0 0.0
    %225 = vmatpush1.msra.mxu0 0.0
    %226 = vmatprep.subr.mxu0 0.0
    %227 = vmatpush1.msra.mxu0 0.0
    %228 = vmatprep.mubr.f32.mxu0 0.0
    %229 = vmatmul.mubr.f32.gmra.mrb[0].mxu0 %v38
    %v230 = vpop.f32.mrb[0].mxu0
    %v231 = vadd.f32 0.0, %v230
    %v232 = vpop.f32.mrb[0].mxu0
    %v233 = vadd.f32 0.0, %v232
    %234 = vmatprep.mubr.f32.mxu0 0.0
    %235 = vmatmul.mubr.f32.gmra.mrb[0].mxu0 %v39
    %v236 = vpop.f32.mrb[0].mxu0
    %v237 = vadd.f32 0.0, %v236
    %v238 = vpop.f32.mrb[0].mxu0
    %v239 = vadd.f32 0.0, %v238
    %240 = vmatprep.mubr.f32.mxu0 0.0
    %241 = vmatmul.mubr.f32.gmra.mrb[0].mxu0 %v40
    %v242 = vpop.f32.mrb[0].mxu0
    %v243 = vadd.f32 0.0, %v242
    %v244 = vpop.f32.mrb[0].mxu0
    %v245 = vadd.f32 0.0, %v244
    %246 = vmatprep.mubr.f32.mxu0 0.0
    %247 = vmatmul.mubr.f32.gmra.mrb[0].mxu0 %v41
    %v248 = vpop.f32.mrb[0].mxu0
    %v249 = vadd.f32 0.0, %v248
    %v250 = vpop.f32.mrb[0].mxu0
    %v251 = vadd.f32 0.0, %v250
    %252 = vdwg.mxu0
    %253 = vst [vmem:[#allocation7] sm:$0xff] %v231
    %254 = vst [vmem:[#allocation7 + $0x8] sm:$0xff] %v233
    %255 = vst [vmem:[#allocation7 + $0x10] sm:$0xff] %v237
    %256 = vst [vmem:[#allocation7 + $0x18] sm:$0xff] %v239
    %257 = vst [vmem:[#allocation7 + $0x20] sm:$0xff] %v243
    %258 = vst [vmem:[#allocation7 + $0x28] sm:$0xff] %v245
    %259 = vst [vmem:[#allocation7 + $0x30] sm:$0xff] %v249
    %260 = vst [vmem:[#allocation7 + $0x38] sm:$0xff] %v251
    // Predicated region
    $region18: #{tpu_custom_call.1} parent=1 // pred_check
      _
    $region19: #{tpu_custom_call.1} parent=1 // pred_check_branch
      %262 = sbr.rel (0) target = $region21
    $region20: #{tpu_custom_call.1} parent=1 // pred_region
      %s264 = ssub.s32 1024, 1024
      %265 = vsyncadd [#allocation4], %s264
      %s266 = sshll.u32 [#allocation7], 4
      %s267 = int_to_ptr.vmem [resolvable:$true] %s266
      %272 = dma.vmem_to_hbm [thread:$0]  %s267, 1024, %s2, [#allocation4], 256, 256, 16
    $region21: #{tpu_custom_call.1} parent=1 // pred_fallthru
      _
    // Predicated region
    $region22: #{tpu_custom_call.1} parent=1 // pred_check
      _
    $region23: #{tpu_custom_call.1} parent=1 // pred_check_branch
      %274 = sbr.rel (0) target = $region25
    $region24: #{tpu_custom_call.1} parent=1 // pred_region
      %275 = dma.done [#allocation4], 1024
    $region25: #{tpu_custom_call.1} parent=1 // pred_fallthru
      _
    %276 = vsyncpa [#allocation3], 1
    %277 = vsyncpa [#allocation6], 1
    %278 = vsyncpa [#allocation4], 1

</llo_original>
